<compile_context>
chip_gen: v7x
topology: tpu7x:2x2x1
jax: 0.10.0
libtpu: 0.0.40
codegen_flags: <defaults>
</compile_context>

<pallas_src>
import math
from functools import partial

import jax
import jax.numpy as jnp
from jax.experimental import pallas as pl
from jax.experimental.pallas import tpu as pltpu

LOG_STD_MAX = 2.0
LOG_STD_MIN = -20.0
_HALF_LOG_2PIE = 0.5 * (math.log(2.0 * math.pi) + 1.0)  # 0.5*log(2*pi*e)
_SLAB_LANES = 128


def _round_up(x, m):
    return ((x + m - 1) // m) * m


def _discriminator_kernel(
    obs_ref, act_ref,            # (T, obs_dim), (T, act_dim)
    w1o_ref, w1a_ref, b1_ref,    # (obs_dim, H1), (act_dim, H1), (1, H1)
    w2_ref, b2_ref,              # (H1, H2), (1, H2)
    wh_ref, bh_ref,              # (H2, 2C+K), (1, 2C+K)   fused heads
    out_ref,                     # (T, 128) packed slab
    *, num_cont, num_disc,
):
    C, K = num_cont, num_disc

    # --- MLP trunk (concat fused by splitting the first matmul) ---
    h = (jnp.dot(obs_ref[...], w1o_ref[...], preferred_element_type=jnp.float32)
         + jnp.dot(act_ref[...], w1a_ref[...], preferred_element_type=jnp.float32)
         + b1_ref[...])
    h = jnp.maximum(h, 0.0)
    h = jnp.dot(h, w2_ref[...], preferred_element_type=jnp.float32) + b2_ref[...]
    h = jnp.maximum(h, 0.0)

    # --- fused heads: one MXU pass, slice the lanes [mu | log_var | logits] ---
    heads = jnp.dot(h, wh_ref[...], preferred_element_type=jnp.float32) + bh_ref[...]
    mu = heads[:, 0:C]
    log_var = jnp.clip(heads[:, C:2 * C], LOG_STD_MIN, LOG_STD_MAX)
    var = jnp.exp(log_var)
    logits = heads[:, 2 * C:2 * C + K]

    # --- softmax (approx reciprocal -> EUP slot) ---
    m = jnp.max(logits, axis=-1, keepdims=True)
    shifted = logits - m
    e = jnp.exp(shifted)
    z = jnp.sum(e, axis=-1, keepdims=True)
    p = e * pl.reciprocal(z, approx=True)

    # Categorical entropy per row from logits: H = log(Z) - sum(p * shifted)
    row_cat_ent = jnp.log(z) - jnp.sum(p * shifted, axis=-1, keepdims=True)   # (T, 1)
    # Normal(mu, scale=var).entropy() per row/skill = 0.5*log(2*pi*e) + log(var)
    row_norm_ent = _HALF_LOG_2PIE + log_var                                    # (T, C)

    # --- single lane-dense store of the packed slab ---
    used = K + 3 * C + 1
    pieces = [p, mu, var, row_norm_ent, row_cat_ent]
    pad_w = out_ref.shape[1] - used
    if pad_w > 0:
        pieces.append(jnp.zeros((out_ref.shape[0], pad_w), jnp.float32))
    out_ref[...] = jnp.concatenate(pieces, axis=-1)


def discriminator_forward(obs, act, params, *, use_bf16=False):
    """Discriminator forward pass.

    Returns (disc, cont_mu, cont_var, disc_entropy, cont_entropy), matching
    the PyTorch module's signature/semantics.
    """
    C = int(params["num_cont_skills"])
    K = int(params["num_disc_skills"])

    obs = jnp.asarray(obs, jnp.float32)
    act = jnp.asarray(act, jnp.float32)
    B, obs_dim = obs.shape
    act_dim = act.shape[1]

    # Batch tiling: up to 128 rows per tile, grid axis fully parallel.
    tile_b = 128 if B >= 128 else _round_up(B, 8)
    b_pad = _round_up(B, tile_b)
    if b_pad != B:
        obs = jnp.pad(obs, ((0, b_pad - B), (0, 0)))
        act = jnp.pad(act, ((0, b_pad - B), (0, 0)))

    b1, w2, b2 = params["b1"], params["w2"], params["b2"]
    bh = params["b_heads"]
    x_dtype = jnp.bfloat16 if use_bf16 else jnp.float32
    obs_k = obs.astype(x_dtype)
    act_k = act.astype(x_dtype)
    w1o_k = params["w1_obs"].astype(x_dtype)
    w1a_k = params["w1_act"].astype(x_dtype)
    w2_k = w2.astype(x_dtype)
    wh_k = params["w_heads"].astype(x_dtype)

    H1 = w2.shape[0]
    H2 = w2.shape[1]
    head_w = 2 * C + K
    slab_lanes = _round_up(K + 3 * C + 1, _SLAB_LANES)

    def full(shape):
        return pl.BlockSpec(shape, lambda i: (0, 0))

    kernel = partial(_discriminator_kernel, num_cont=C, num_disc=K)

    slab = pl.pallas_call(
        kernel,
        out_shape=jax.ShapeDtypeStruct((b_pad, slab_lanes), jnp.float32),
        grid=(b_pad // tile_b,),
        in_specs=[
            pl.BlockSpec((tile_b, obs_dim), lambda i: (i, 0)),
            pl.BlockSpec((tile_b, act_dim), lambda i: (i, 0)),
            full((obs_dim, H1)),
            full((act_dim, H1)),
            full((1, H1)),
            full((H1, H2)),
            full((1, H2)),
            full((H2, head_w)),
            full((1, head_w)),
        ],
        out_specs=pl.BlockSpec((tile_b, slab_lanes), lambda i: (i, 0)),
        compiler_params=pltpu.CompilerParams(
            dimension_semantics=("parallel",)),
    )(obs_k, act_k, w1o_k, w1a_k, b1, w2_k, b2, wh_k, bh)

    # Unpack the lane-dense slab (and finish the two batch means here so the
    # batch grid axis stays fully parallel / megacore-shardable).
    slab = slab[:B]
    disc = slab[:, 0:K]
    cont_mu = slab[:, K:K + C]
    cont_var = slab[:, K + C:K + 2 * C]
    cont_entropy = jnp.mean(slab[:, K + 2 * C:K + 3 * C], axis=0)   # (C,)
    disc_entropy = jnp.mean(slab[:, K + 3 * C])                     # scalar
    return disc, cont_mu, cont_var, disc_entropy, cont_entropy


def init_params(key, obs_dim, act_dim, num_disc_skills, num_cont_skills, hidden_sizes):
    """Deterministic synthetic init. Shapes match the PyTorch module; the first
    layer is pre-split (obs/act) and the three heads are pre-fused so the hot
    path never pays for concatenation."""
    d_in = obs_dim + act_dim
    h1, h2 = hidden_sizes
    keys = jax.random.split(key, 10)

    def lin(kw, kb, fan_in, fan_out):
        bound = 1.0 / math.sqrt(fan_in)
        w = jax.random.uniform(kw, (fan_in, fan_out), jnp.float32, -bound, bound)
        b = jax.random.uniform(kb, (1, fan_out), jnp.float32, -bound, bound)
        return w, b

    w1, b1 = lin(keys[0], keys[1], d_in, h1)
    w2, b2 = lin(keys[2], keys[3], h1, h2)
    wmu, bmu = lin(keys[4], keys[5], h2, num_cont_skills)
    wlv, blv = lin(keys[6], keys[7], h2, num_cont_skills)
    wd, bd = lin(keys[8], keys[9], h2, num_disc_skills)

    return dict(
        w1_obs=w1[:obs_dim], w1_act=w1[obs_dim:], b1=b1,
        w2=w2, b2=b2,
        w_heads=jnp.concatenate([wmu, wlv, wd], axis=-1),
        b_heads=jnp.concatenate([bmu, blv, bd], axis=-1),
        num_cont_skills=num_cont_skills,
        num_disc_skills=num_disc_skills,
    )


def _reference_forward(obs, act, params):
    """Pure-JAX reference with identical semantics (for the self-check)."""
    C = int(params["num_cont_skills"])
    x = jnp.concatenate([obs, act], axis=-1)
    w1 = jnp.concatenate([params["w1_obs"], params["w1_act"]], axis=0)
    h = jnp.maximum(x @ w1 + params["b1"], 0.0)
    h = jnp.maximum(h @ params["w2"] + params["b2"], 0.0)
    heads = h @ params["w_heads"] + params["b_heads"]
    mu = heads[:, :C]
    log_var = jnp.clip(heads[:, C:2 * C], LOG_STD_MIN, LOG_STD_MAX)
    var = jnp.exp(log_var)
    logits = heads[:, 2 * C:]
    p = jax.nn.softmax(logits, axis=-1)
    disc_ent = jnp.mean(-jnp.sum(p * jnp.log(p), axis=-1))
    cont_ent = jnp.mean(_HALF_LOG_2PIE + log_var, axis=0)
    return p, mu, var, disc_ent, cont_ent


if __name__ == "__main__":
    obs_dim, act_dim = 12, 4
    num_disc_skills, num_cont_skills = 8, 4
    hidden_sizes = (32, 32)
    batch = 8

    key = jax.random.PRNGKey(0)
    k_obs, k_act, k_par = jax.random.split(key, 3)
    obs = jax.random.normal(k_obs, (batch, obs_dim), jnp.float32)
    act = jax.random.normal(k_act, (batch, act_dim), jnp.float32)
    params = init_params(k_par, obs_dim, act_dim,
                         num_disc_skills, num_cont_skills, hidden_sizes)

    outs = discriminator_forward(obs, act, params)
    disc, cont_mu, cont_var, disc_entropy, cont_entropy = jax.block_until_ready(outs)

    # Shape checks (match the PyTorch module's outputs).
    assert disc.shape == (batch, num_disc_skills)
    assert cont_mu.shape == (batch, num_cont_skills)
    assert cont_var.shape == (batch, num_cont_skills)
    assert disc_entropy.shape == ()
    assert cont_entropy.shape == (num_cont_skills,)

    # Numeric checks against a pure-JAX reference (loose tolerance for the
    # softmax path because of the approx EUP reciprocal).
    r_disc, r_mu, r_var, r_dent, r_cent = _reference_forward(obs, act, params)
    assert bool(jnp.allclose(cont_mu, r_mu, atol=1e-4, rtol=1e-4))
    assert bool(jnp.allclose(cont_var, r_var, atol=1e-4, rtol=1e-4))
    assert bool(jnp.allclose(cont_entropy, r_cent, atol=1e-4, rtol=1e-4))
    assert bool(jnp.allclose(disc, r_disc, atol=5e-3, rtol=5e-3))
    assert bool(jnp.allclose(disc_entropy, r_dent, atol=5e-3, rtol=5e-3))
    assert bool(jnp.all(jnp.abs(jnp.sum(disc, axis=-1) - 1.0) < 5e-3))

    print("KERNEL_OK")
</pallas_src>

<mosaic_0001>
module attributes {stable_mosaic.version = 11 : i64} {
  func.func @_discriminator_kernel(%arg0: i32, %arg1: memref<8x12xf32, #tpu.memory_space<vmem>>, %arg2: memref<8x4xf32, #tpu.memory_space<vmem>>, %arg3: memref<12x32xf32, #tpu.memory_space<vmem>>, %arg4: memref<4x32xf32, #tpu.memory_space<vmem>>, %arg5: memref<1x32xf32, #tpu.memory_space<vmem>>, %arg6: memref<32x32xf32, #tpu.memory_space<vmem>>, %arg7: memref<1x32xf32, #tpu.memory_space<vmem>>, %arg8: memref<32x16xf32, #tpu.memory_space<vmem>>, %arg9: memref<1x16xf32, #tpu.memory_space<vmem>>, %arg10: memref<8x128xf32, #tpu.memory_space<vmem>>) attributes {dimension_semantics = [#tpu.dimension_semantics<parallel>], iteration_bounds = array<i64: 1>, scalar_prefetch = 0 : i64, scratch_operands = 0 : i64, tpu.core_type = #tpu.core_type<tc>, window_params = [{transform_indices = @transform_0, window_bounds = array<i64: 8, 12>}, {transform_indices = @transform_1, window_bounds = array<i64: 8, 4>}, {pipeline_mode = #tpu.pipeline_mode<synchronous>, transform_indices = @transform_2, window_bounds = array<i64: 12, 32>}, {pipeline_mode = #tpu.pipeline_mode<synchronous>, transform_indices = @transform_3, window_bounds = array<i64: 4, 32>}, {pipeline_mode = #tpu.pipeline_mode<synchronous>, transform_indices = @transform_4, window_bounds = array<i64: 1, 32>}, {pipeline_mode = #tpu.pipeline_mode<synchronous>, transform_indices = @transform_5, window_bounds = array<i64: 32, 32>}, {pipeline_mode = #tpu.pipeline_mode<synchronous>, transform_indices = @transform_6, window_bounds = array<i64: 1, 32>}, {pipeline_mode = #tpu.pipeline_mode<synchronous>, transform_indices = @transform_7, window_bounds = array<i64: 32, 16>}, {pipeline_mode = #tpu.pipeline_mode<synchronous>, transform_indices = @transform_8, window_bounds = array<i64: 1, 16>}, {transform_indices = @transform_9, window_bounds = array<i64: 8, 128>}]} {
    %c0 = arith.constant 0 : index
    %c0_0 = arith.constant 0 : index
    %0 = vector.load %arg1[%c0, %c0_0] : memref<8x12xf32, #tpu.memory_space<vmem>>, vector<8x12xf32>
    %c0_1 = arith.constant 0 : index
    %c0_2 = arith.constant 0 : index
    %1 = vector.load %arg3[%c0_1, %c0_2] : memref<12x32xf32, #tpu.memory_space<vmem>>, vector<12x32xf32>
    %cst = arith.constant dense<0.000000e+00> : vector<8x32xf32>
    %2 = tpu.matmul %0, %1, %cst {dimension_numbers = #tpu.dot_dimension_numbers<[1], [0], [0], [1], [0, 0, 1, 1], [], []>} : vector<8x12xf32>, vector<12x32xf32>, vector<8x32xf32> -> vector<8x32xf32>
    %c0_3 = arith.constant 0 : index
    %c0_4 = arith.constant 0 : index
    %3 = vector.load %arg2[%c0_3, %c0_4] : memref<8x4xf32, #tpu.memory_space<vmem>>, vector<8x4xf32>
    %c0_5 = arith.constant 0 : index
    %c0_6 = arith.constant 0 : index
    %4 = vector.load %arg4[%c0_5, %c0_6] : memref<4x32xf32, #tpu.memory_space<vmem>>, vector<4x32xf32>
    %cst_7 = arith.constant dense<0.000000e+00> : vector<8x32xf32>
    %5 = tpu.matmul %3, %4, %cst_7 {dimension_numbers = #tpu.dot_dimension_numbers<[1], [0], [0], [1], [0, 0, 1, 1], [], []>} : vector<8x4xf32>, vector<4x32xf32>, vector<8x32xf32> -> vector<8x32xf32>
    %6 = arith.addf %2, %5 : vector<8x32xf32>
    %c0_8 = arith.constant 0 : index
    %c0_9 = arith.constant 0 : index
    %7 = vector.load %arg5[%c0_8, %c0_9] : memref<1x32xf32, #tpu.memory_space<vmem>>, vector<1x32xf32>
    %8 = vector.broadcast %7 : vector<1x32xf32> to vector<8x32xf32>
    %9 = arith.addf %6, %8 : vector<8x32xf32>
    %cst_10 = arith.constant 0.000000e+00 : f32
    %10 = vector.broadcast %cst_10 : f32 to vector<8x32xf32>
    %11 = arith.maximumf %9, %10 : vector<8x32xf32>
    %c0_11 = arith.constant 0 : index
    %c0_12 = arith.constant 0 : index
    %12 = vector.load %arg6[%c0_11, %c0_12] : memref<32x32xf32, #tpu.memory_space<vmem>>, vector<32x32xf32>
    %cst_13 = arith.constant dense<0.000000e+00> : vector<8x32xf32>
    %13 = tpu.matmul %11, %12, %cst_13 {dimension_numbers = #tpu.dot_dimension_numbers<[1], [0], [0], [1], [0, 0, 1, 1], [], []>} : vector<8x32xf32>, vector<32x32xf32>, vector<8x32xf32> -> vector<8x32xf32>
    %c0_14 = arith.constant 0 : index
    %c0_15 = arith.constant 0 : index
    %14 = vector.load %arg7[%c0_14, %c0_15] : memref<1x32xf32, #tpu.memory_space<vmem>>, vector<1x32xf32>
    %15 = vector.broadcast %14 : vector<1x32xf32> to vector<8x32xf32>
    %16 = arith.addf %13, %15 : vector<8x32xf32>
    %cst_16 = arith.constant 0.000000e+00 : f32
    %17 = vector.broadcast %cst_16 : f32 to vector<8x32xf32>
    %18 = arith.maximumf %16, %17 : vector<8x32xf32>
    %c0_17 = arith.constant 0 : index
    %c0_18 = arith.constant 0 : index
    %19 = vector.load %arg8[%c0_17, %c0_18] : memref<32x16xf32, #tpu.memory_space<vmem>>, vector<32x16xf32>
    %cst_19 = arith.constant dense<0.000000e+00> : vector<8x16xf32>
    %20 = tpu.matmul %18, %19, %cst_19 {dimension_numbers = #tpu.dot_dimension_numbers<[1], [0], [0], [1], [0, 0, 1, 1], [], []>} : vector<8x32xf32>, vector<32x16xf32>, vector<8x16xf32> -> vector<8x16xf32>
    %c0_20 = arith.constant 0 : index
    %c0_21 = arith.constant 0 : index
    %21 = vector.load %arg9[%c0_20, %c0_21] : memref<1x16xf32, #tpu.memory_space<vmem>>, vector<1x16xf32>
    %22 = vector.broadcast %21 : vector<1x16xf32> to vector<8x16xf32>
    %23 = arith.addf %20, %22 : vector<8x16xf32>
    %24 = vector.extract_strided_slice %23 {offsets = [0, 0], sizes = [8, 4], strides = [1, 1]} : vector<8x16xf32> to vector<8x4xf32>
    %25 = vector.extract_strided_slice %23 {offsets = [0, 4], sizes = [8, 4], strides = [1, 1]} : vector<8x16xf32> to vector<8x4xf32>
    %cst_22 = arith.constant -2.000000e+01 : f32
    %cst_23 = arith.constant 2.000000e+00 : f32
    %26 = vector.broadcast %cst_22 : f32 to vector<8x4xf32>
    %27 = arith.maximumf %26, %25 : vector<8x4xf32>
    %28 = vector.broadcast %cst_23 : f32 to vector<8x4xf32>
    %29 = arith.minimumf %28, %27 : vector<8x4xf32>
    %30 = math.exp %29 : vector<8x4xf32>
    %31 = vector.extract_strided_slice %23 {offsets = [0, 8], sizes = [8, 8], strides = [1, 1]} : vector<8x16xf32> to vector<8x8xf32>
    %cst_24 = arith.constant dense<0xFF800000> : vector<8xf32>
    %32 = vector.multi_reduction <maximumf>, %31, %cst_24 [1] : vector<8x8xf32> to vector<8xf32>
    %33 = vector.shape_cast %32 : vector<8xf32> to vector<8x1xf32>
    %34 = vector.broadcast %33 : vector<8x1xf32> to vector<8x8xf32>
    %35 = arith.subf %31, %34 : vector<8x8xf32>
    %36 = math.exp %35 : vector<8x8xf32>
    %cst_25 = arith.constant dense<0.000000e+00> : vector<8xf32>
    %37 = vector.multi_reduction <add>, %36, %cst_25 [1] : vector<8x8xf32> to vector<8xf32>
    %38 = vector.shape_cast %37 : vector<8xf32> to vector<8x1xf32>
    %39 = tpu.reciprocal %38 {approx = true} : vector<8x1xf32> -> vector<8x1xf32>
    %40 = vector.broadcast %39 : vector<8x1xf32> to vector<8x8xf32>
    %41 = arith.mulf %36, %40 : vector<8x8xf32>
    %42 = math.log %38 : vector<8x1xf32>
    %43 = arith.mulf %41, %35 : vector<8x8xf32>
    %cst_26 = arith.constant dense<0.000000e+00> : vector<8xf32>
    %44 = vector.multi_reduction <add>, %43, %cst_26 [1] : vector<8x8xf32> to vector<8xf32>
    %45 = vector.shape_cast %44 : vector<8xf32> to vector<8x1xf32>
    %46 = arith.subf %42, %45 : vector<8x1xf32>
    %cst_27 = arith.constant 1.41893852 : f32
    %47 = vector.broadcast %cst_27 : f32 to vector<8x4xf32>
    %48 = arith.addf %47, %29 : vector<8x4xf32>
    %cst_28 = arith.constant 0.000000e+00 : f32
    %49 = vector.broadcast %cst_28 : f32 to vector<8x107xf32>
    %50 = tpu.concatenate %41, %24, %30, %48, %46, %49 in 1 : vector<8x8xf32>, vector<8x4xf32>, vector<8x4xf32>, vector<8x4xf32>, vector<8x1xf32>, vector<8x107xf32> -> vector<8x128xf32>
    %c0_29 = arith.constant 0 : index
    %c0_30 = arith.constant 0 : index
    %51 = vector.load %arg10[%c0_29, %c0_30] : memref<8x128xf32, #tpu.memory_space<vmem>>, vector<8x128xf32>
    tpu.vector_store %arg10[%c0_29, %c0_30], %50 {strides = array<i32>} : memref<8x128xf32, #tpu.memory_space<vmem>>, vector<8x128xf32>,
    return
  }
  func.func @transform_0(%arg0: i32) -> (i32, i32) {
    %c0_i32 = arith.constant 0 : i32
    %c0_i32_0 = arith.constant 0 : i32
    return %arg0, %c0_i32 : i32, i32
  }
  func.func @transform_1(%arg0: i32) -> (i32, i32) {
    %c0_i32 = arith.constant 0 : i32
    %c0_i32_0 = arith.constant 0 : i32
    return %arg0, %c0_i32 : i32, i32
  }
  func.func @transform_2(%arg0: i32) -> (i32, i32) {
    %c0_i32 = arith.constant 0 : i32
    %c0_i32_0 = arith.constant 0 : i32
    %c0_i32_1 = arith.constant 0 : i32
    return %c0_i32, %c0_i32_0 : i32, i32
  }
  func.func @transform_3(%arg0: i32) -> (i32, i32) {
    %c0_i32 = arith.constant 0 : i32
    %c0_i32_0 = arith.constant 0 : i32
    %c0_i32_1 = arith.constant 0 : i32
    return %c0_i32, %c0_i32_0 : i32, i32
  }
  func.func @transform_4(%arg0: i32) -> (i32, i32) {
    %c0_i32 = arith.constant 0 : i32
    %c0_i32_0 = arith.constant 0 : i32
    %c0_i32_1 = arith.constant 0 : i32
    return %c0_i32, %c0_i32_0 : i32, i32
  }
  func.func @transform_5(%arg0: i32) -> (i32, i32) {
    %c0_i32 = arith.constant 0 : i32
    %c0_i32_0 = arith.constant 0 : i32
    %c0_i32_1 = arith.constant 0 : i32
    return %c0_i32, %c0_i32_0 : i32, i32
  }
  func.func @transform_6(%arg0: i32) -> (i32, i32) {
    %c0_i32 = arith.constant 0 : i32
    %c0_i32_0 = arith.constant 0 : i32
    %c0_i32_1 = arith.constant 0 : i32
    return %c0_i32, %c0_i32_0 : i32, i32
  }
  func.func @transform_7(%arg0: i32) -> (i32, i32) {
    %c0_i32 = arith.constant 0 : i32
    %c0_i32_0 = arith.constant 0 : i32
    %c0_i32_1 = arith.constant 0 : i32
    return %c0_i32, %c0_i32_0 : i32, i32
  }
  func.func @transform_8(%arg0: i32) -> (i32, i32) {
    %c0_i32 = arith.constant 0 : i32
    %c0_i32_0 = arith.constant 0 : i32
    %c0_i32_1 = arith.constant 0 : i32
    return %c0_i32, %c0_i32_0 : i32, i32
  }
  func.func @transform_9(%arg0: i32) -> (i32, i32) {
    %c0_i32 = arith.constant 0 : i32
    %c0_i32_0 = arith.constant 0 : i32
    return %arg0, %c0_i32 : i32, i32
  }
}

</mosaic_0001>

<llo_original>
// kernel: tpu_custom_call.1
$region0: #{tpu_custom_call.1}
  #allocation0 [shape = 'u32[]', space=smem, size = 0x4, offset = 0x4, fixed_abs, tag = 'smem constant byte address 0x4 - core index']
  #allocation1 [shape = 'u32[144,128]{1,0:T(1,128)}', space=vmem, size = 0x12000, scoped, tag = 'internal scratch']
  %s0 = inlined_call_operand.vmem [shape: f32[8,12], index: 0, kind: input, shape index: {}]
  %s1 = inlined_call_operand.vmem [shape: f32[8,4], index: 1, kind: input, shape index: {}]
  %s2 = inlined_call_operand.vmem [shape: f32[12,32], index: 2, kind: input, shape index: {}]
  %s3 = inlined_call_operand.vmem [shape: f32[4,32], index: 3, kind: input, shape index: {}]
  %s4 = inlined_call_operand.vmem [shape: f32[1,32], index: 4, kind: input, shape index: {}]
  %s5 = inlined_call_operand.vmem [shape: f32[32,32], index: 5, kind: input, shape index: {}]
  %s6 = inlined_call_operand.vmem [shape: f32[1,32], index: 6, kind: input, shape index: {}]
  %s7 = inlined_call_operand.vmem [shape: f32[32,16], index: 7, kind: input, shape index: {}]
  %s8 = inlined_call_operand.vmem [shape: f32[1,16], index: 8, kind: input, shape index: {}]
  %s9 = inlined_call_operand.hbm [shape: f32[8,128], index: 9, kind: output, shape index: {}]
  %s10 = sld [smem:[#allocation0]]
  $region46: #{tpu_custom_call.1} parent=0
    _
  %s12 = ssub.s32 1, %s10
  %s13 = scalar_select 0, %s12, %s10
  $region1: #{tpu_custom_call.1} parent=0
    #allocation2 [shape = 'u8[4096]{0}', space=vmem, size = 0x1000, scoped, tag = 'output window, operand 0, single buffered']
    #allocation3 [shape = 's32[1]{0}', space=sflag, size = 0x4, scoped, tag = 'scoped memory for tpu_custom_call.1']
    %14 = vsyncpa [#allocation3], 0
    // Predicated region
    $region2: #{tpu_custom_call.1} parent=1 // pred_check
      _
    $region3: #{tpu_custom_call.1} parent=1 // pred_check_branch
      %16 = sbr.rel (0) target = $region5
    $region4: #{tpu_custom_call.1} parent=1 // pred_region
      _
    $region5: #{tpu_custom_call.1} parent=1 // pred_fallthru
      _
    // Predicated region
    $region6: #{tpu_custom_call.1} parent=1 // pred_check
      _
    $region7: #{tpu_custom_call.1} parent=1 // pred_check_branch
      %18 = sbr.rel (0) target = $region9
    $region8: #{tpu_custom_call.1} parent=1 // pred_region
      _
    $region9: #{tpu_custom_call.1} parent=1 // pred_fallthru
      _
    // Predicated region
    $region10: #{tpu_custom_call.1} parent=1 // pred_check
      _
    $region11: #{tpu_custom_call.1} parent=1 // pred_check_branch
      %20 = sbr.rel (0) target = $region13
    $region12: #{tpu_custom_call.1} parent=1 // pred_region
      _
    $region13: #{tpu_custom_call.1} parent=1 // pred_fallthru
      _
    // Predicated region
    $region14: #{tpu_custom_call.1} parent=1 // pred_check
      _
    $region15: #{tpu_custom_call.1} parent=1 // pred_check_branch
      %22 = sbr.rel (0) target = $region17
    $region16: #{tpu_custom_call.1} parent=1 // pred_region
      _
    $region17: #{tpu_custom_call.1} parent=1 // pred_fallthru
      _
    // Predicated region
    $region18: #{tpu_custom_call.1} parent=1 // pred_check
      _
    $region19: #{tpu_custom_call.1} parent=1 // pred_check_branch
      %24 = sbr.rel (0) target = $region21
    $region20: #{tpu_custom_call.1} parent=1 // pred_region
      _
    $region21: #{tpu_custom_call.1} parent=1 // pred_fallthru
      _
    // Predicated region
    $region22: #{tpu_custom_call.1} parent=1 // pred_check
      _
    $region23: #{tpu_custom_call.1} parent=1 // pred_check_branch
      %26 = sbr.rel (0) target = $region25
    $region24: #{tpu_custom_call.1} parent=1 // pred_region
      _
    $region25: #{tpu_custom_call.1} parent=1 // pred_fallthru
      _
    // Predicated region
    $region26: #{tpu_custom_call.1} parent=1 // pred_check
      _
    $region27: #{tpu_custom_call.1} parent=1 // pred_check_branch
      %28 = sbr.rel (0) target = $region29
    $region28: #{tpu_custom_call.1} parent=1 // pred_region
      _
    $region29: #{tpu_custom_call.1} parent=1 // pred_fallthru
      _
    // Predicated region
    $region30: #{tpu_custom_call.1} parent=1 // pred_check
      _
    $region31: #{tpu_custom_call.1} parent=1 // pred_check_branch
      %30 = sbr.rel (0) target = $region33
    $region32: #{tpu_custom_call.1} parent=1 // pred_region
      _
    $region33: #{tpu_custom_call.1} parent=1 // pred_fallthru
      _
    // Predicated region
    $region34: #{tpu_custom_call.1} parent=1 // pred_check
      _
    $region35: #{tpu_custom_call.1} parent=1 // pred_check_branch
      %32 = sbr.rel (0) target = $region37
    $region36: #{tpu_custom_call.1} parent=1 // pred_region
      _
    $region37: #{tpu_custom_call.1} parent=1 // pred_fallthru
      _
    %v33 = vld [vmem:[%s0] sm:$0xff]
    %v34 = vld [vmem:[%s2] sm:$0xff]
    %v35 = vld [vmem:[%s2 + $0x8] sm:$0xf]
    %v36 = vld [vmem:[%s1] sm:$0xff]
    %v37 = vld [vmem:[%s3] sm:$0xf]
    %vm38 = vcmask 31744
    %v40 = vsel %vm38, %v36, 0
    %vm42 = vcmask 1043456
    %v44 = vsel %vm42, %v37, 0
    %46 = vmatprep.subr.mxu0 0.0
    %47 = vmatpush1.msra.mxu0 %v44
    %48 = vmatprep.subr.mxu0 0.0
    %49 = vmatpush1.msra.mxu0 0.0
    %50 = vmatprep.subr.mxu0 0.0
    %51 = vmatpush1.msra.mxu0 0.0
    %52 = vmatprep.subr.mxu0 0.0
    %53 = vmatpush1.msra.mxu0 0.0
    %54 = vmatprep.subr.mxu0 0.0
    %55 = vmatpush1.msra.mxu0 0.0
    %56 = vmatprep.subr.mxu0 0.0
    %57 = vmatpush1.msra.mxu0 0.0
    %58 = vmatprep.subr.mxu0 0.0
    %59 = vmatpush1.msra.mxu0 0.0
    %60 = vmatprep.subr.mxu0 0.0
    %61 = vmatpush1.msra.mxu0 0.0
    %62 = vmatprep.subr.mxu0 0.0
    %63 = vmatpush1.msra.mxu0 0.0
    %64 = vmatprep.subr.mxu0 0.0
    %65 = vmatpush1.msra.mxu0 0.0
    %66 = vmatprep.subr.mxu0 0.0
    %67 = vmatpush1.msra.mxu0 0.0
    %68 = vmatprep.subr.mxu0 0.0
    %69 = vmatpush1.msra.mxu0 0.0
    %70 = vmatprep.subr.mxu0 0.0
    %71 = vmatpush1.msra.mxu0 0.0
    %72 = vmatprep.subr.mxu0 0.0
    %73 = vmatpush1.msra.mxu0 0.0
    %74 = vmatprep.subr.mxu0 0.0
    %75 = vmatpush1.msra.mxu0 0.0
    %76 = vmatprep.subr.mxu0 0.0
    %77 = vmatpush1.msra.mxu0 0.0
    %78 = vmatprep.subr.mxu0 0.0
    %79 = vmatpush1.msra.mxu0 0.0
    %80 = vmatprep.subr.mxu0 0.0
    %81 = vmatpush1.msra.mxu0 0.0
    %82 = vmatprep.subr.mxu0 0.0
    %83 = vmatpush1.msra.mxu0 0.0
    %84 = vmatprep.subr.mxu0 0.0
    %85 = vmatpush1.msra.mxu0 0.0
    %86 = vmatprep.subr.mxu0 0.0
    %87 = vmatpush1.msra.mxu0 0.0
    %88 = vmatprep.subr.mxu0 0.0
    %89 = vmatpush1.msra.mxu0 0.0
    %90 = vmatprep.subr.mxu0 0.0
    %91 = vmatpush1.msra.mxu0 0.0
    %92 = vmatprep.subr.mxu0 0.0
    %93 = vmatpush1.msra.mxu0 0.0
    %94 = vmatprep.subr.mxu0 0.0
    %95 = vmatpush1.msra.mxu0 0.0
    %96 = vmatprep.subr.mxu0 0.0
    %97 = vmatpush1.msra.mxu0 0.0
    %98 = vmatprep.subr.mxu0 0.0
    %99 = vmatpush1.msra.mxu0 0.0
    %100 = vmatprep.subr.mxu0 0.0
    %101 = vmatpush1.msra.mxu0 0.0
    %102 = vmatprep.subr.mxu0 0.0
    %103 = vmatpush1.msra.mxu0 0.0
    %104 = vmatprep.subr.mxu0 0.0
    %105 = vmatpush1.msra.mxu0 0.0
    %106 = vmatprep.subr.mxu0 0.0
    %107 = vmatpush1.msra.mxu0 0.0
    %108 = vmatprep.subr.mxu0 0.0
    %109 = vmatpush1.msra.mxu0 0.0
    %110 = vmatprep.mubr.f32.mxu0 0.0
    %111 = vmatmul.mubr.f32.gmra.mrb[0].mxu0 %v40
    %v112 = vpop.f32.mrb[0].mxu0
    %v113 = vadd.f32 0.0, %v112
    %v114 = vpop.f32.mrb[0].mxu0
    %115 = vdwg.mxu0
    %vm116 = vcmask 97280
    %v118 = vsel %vm116, %v33, 0
    %v121 = vsel %vm42, %v35, 0
    %123 = vmatprep.subr.mxu0 0.0
    %124 = vmatpush1.msra.mxu0 %v34
    %125 = vmatprep.subr.mxu0 0.0
    %126 = vmatpush1.msra.mxu0 %v121
    %127 = vmatprep.subr.mxu0 0.0
    %128 = vmatpush1.msra.mxu0 0.0
    %129 = vmatprep.subr.mxu0 0.0
    %130 = vmatpush1.msra.mxu0 0.0
    %131 = vmatprep.subr.mxu0 0.0
    %132 = vmatpush1.msra.mxu0 0.0
    %133 = vmatprep.subr.mxu0 0.0
    %134 = vmatpush1.msra.mxu0 0.0
    %135 = vmatprep.subr.mxu0 0.0
    %136 = vmatpush1.msra.mxu0 0.0
    %137 = vmatprep.subr.mxu0 0.0
    %138 = vmatpush1.msra.mxu0 0.0
    %139 = vmatprep.subr.mxu0 0.0
    %140 = vmatpush1.msra.mxu0 0.0
    %141 = vmatprep.subr.mxu0 0.0
    %142 = vmatpush1.msra.mxu0 0.0
    %143 = vmatprep.subr.mxu0 0.0
    %144 = vmatpush1.msra.mxu0 0.0
    %145 = vmatprep.subr.mxu0 0.0
    %146 = vmatpush1.msra.mxu0 0.0
    %147 = vmatprep.subr.mxu0 0.0
    %148 = vmatpush1.msra.mxu0 0.0
    %149 = vmatprep.subr.mxu0 0.0
    %150 = vmatpush1.msra.mxu0 0.0
    %151 = vmatprep.subr.mxu0 0.0
    %152 = vmatpush1.msra.mxu0 0.0
    %153 = vmatprep.subr.mxu0 0.0
    %154 = vmatpush1.msra.mxu0 0.0
    %155 = vmatprep.subr.mxu0 0.0
    %156 = vmatpush1.msra.mxu0 0.0
    %157 = vmatprep.subr.mxu0 0.0
    %158 = vmatpush1.msra.mxu0 0.0
    %159 = vmatprep.subr.mxu0 0.0
    %160 = vmatpush1.msra.mxu0 0.0
    %161 = vmatprep.subr.mxu0 0.0
    %162 = vmatpush1.msra.mxu0 0.0
    %163 = vmatprep.subr.mxu0 0.0
    %164 = vmatpush1.msra.mxu0 0.0
    %165 = vmatprep.subr.mxu0 0.0
    %166 = vmatpush1.msra.mxu0 0.0
    %167 = vmatprep.subr.mxu0 0.0
    %168 = vmatpush1.msra.mxu0 0.0
    %169 = vmatprep.subr.mxu0 0.0
    %170 = vmatpush1.msra.mxu0 0.0
    %171 = vmatprep.subr.mxu0 0.0
    %172 = vmatpush1.msra.mxu0 0.0
    %173 = vmatprep.subr.mxu0 0.0
    %174 = vmatpush1.msra.mxu0 0.0
    %175 = vmatprep.subr.mxu0 0.0
    %176 = vmatpush1.msra.mxu0 0.0
    %177 = vmatprep.subr.mxu0 0.0
    %178 = vmatpush1.msra.mxu0 0.0
    %179 = vmatprep.subr.mxu0 0.0
    %180 = vmatpush1.msra.mxu0 0.0
    %181 = vmatprep.subr.mxu0 0.0
    %182 = vmatpush1.msra.mxu0 0.0
    %183 = vmatprep.subr.mxu0 0.0
    %184 = vmatpush1.msra.mxu0 0.0
    %185 = vmatprep.subr.mxu0 0.0
    %186 = vmatpush1.msra.mxu0 0.0
    %187 = vmatprep.mubr.f32.mxu0 0.0
    %188 = vmatmul.mubr.f32.gmra.mrb[0].mxu0 %v118
    %v189 = vpop.f32.mrb[0].mxu0
    %v190 = vadd.f32 %v113, %v189
    %v191 = vpop.f32.mrb[0].mxu0
    %192 = vdwg.mxu0
    %v193 = vld [vmem:[%s4] sm:$0x1]
    %v195 = vlaneseq
    %v196 = vshrl.u32 %v195, 7
    %v197 = vsub.s32 0, %v196
    %v198 = vrot.slane %v193, %v197
    %v200 = vadd.f32 %v190, %v198
    %v201 = vmax.f32 %v200, 0.0
    %v202 = vld [vmem:[%s5] sm:$0xff]
    %v203 = vld [vmem:[%s5 + $0x8] sm:$0xff]
    %v204 = vld [vmem:[%s5 + $0x10] sm:$0xff]
    %v205 = vld [vmem:[%s5 + $0x18] sm:$0xff]
    %v206 = vld [vmem:[%s6] sm:$0x1]
    %v208 = vlaneseq
    %v209 = vshrl.u32 %v208, 7
    %v210 = vsub.s32 0, %v209
    %v211 = vrot.slane %v206, %v210
    %vm213 = vcmask 261120
    %v215 = vsel %vm213, %v201, 0
    %217 = vmatprep.subr.mxu0 0.0
    %218 = vmatpush1.msra.mxu0 %v202
    %219 = vmatprep.subr.mxu0 0.0
    %220 = vmatpush1.msra.mxu0 %v203
    %221 = vmatprep.subr.mxu0 0.0
    %222 = vmatpush1.msra.mxu0 %v204
    %223 = vmatprep.subr.mxu0 0.0
    %224 = vmatpush1.msra.mxu0 %v205
    %225 = vmatprep.subr.mxu0 0.0
    %226 = vmatpush1.msra.mxu0 0.0
    %227 = vmatprep.subr.mxu0 0.0
    %228 = vmatpush1.msra.mxu0 0.0
    %229 = vmatprep.subr.mxu0 0.0
    %230 = vmatpush1.msra.mxu0 0.0
    %231 = vmatprep.subr.mxu0 0.0
    %232 = vmatpush1.msra.mxu0 0.0
    %233 = vmatprep.subr.mxu0 0.0
    %234 = vmatpush1.msra.mxu0 0.0
    %235 = vmatprep.subr.mxu0 0.0
    %236 = vmatpush1.msra.mxu0 0.0
    %237 = vmatprep.subr.mxu0 0.0
    %238 = vmatpush1.msra.mxu0 0.0
    %239 = vmatprep.subr.mxu0 0.0
    %240 = vmatpush1.msra.mxu0 0.0
    %241 = vmatprep.subr.mxu0 0.0
    %242 = vmatpush1.msra.mxu0 0.0
    %243 = vmatprep.subr.mxu0 0.0
    %244 = vmatpush1.msra.mxu0 0.0
    %245 = vmatprep.subr.mxu0 0.0
    %246 = vmatpush1.msra.mxu0 0.0
    %247 = vmatprep.subr.mxu0 0.0
    %248 = vmatpush1.msra.mxu0 0.0
    %249 = vmatprep.subr.mxu0 0.0
    %250 = vmatpush1.msra.mxu0 0.0
    %251 = vmatprep.subr.mxu0 0.0
    %252 = vmatpush1.msra.mxu0 0.0
    %253 = vmatprep.subr.mxu0 0.0
    %254 = vmatpush1.msra.mxu0 0.0
    %255 = vmatprep.subr.mxu0 0.0
    %256 = vmatpush1.msra.mxu0 0.0
    %257 = vmatprep.subr.mxu0 0.0
    %258 = vmatpush1.msra.mxu0 0.0
    %259 = vmatprep.subr.mxu0 0.0
    %260 = vmatpush1.msra.mxu0 0.0
    %261 = vmatprep.subr.mxu0 0.0
    %262 = vmatpush1.msra.mxu0 0.0
    %263 = vmatprep.subr.mxu0 0.0
    %264 = vmatpush1.msra.mxu0 0.0
    %265 = vmatprep.subr.mxu0 0.0
    %266 = vmatpush1.msra.mxu0 0.0
    %267 = vmatprep.subr.mxu0 0.0
    %268 = vmatpush1.msra.mxu0 0.0
    %269 = vmatprep.subr.mxu0 0.0
    %270 = vmatpush1.msra.mxu0 0.0
    %271 = vmatprep.subr.mxu0 0.0
    %272 = vmatpush1.msra.mxu0 0.0
    %273 = vmatprep.subr.mxu0 0.0
    %274 = vmatpush1.msra.mxu0 0.0
    %275 = vmatprep.subr.mxu0 0.0
    %276 = vmatpush1.msra.mxu0 0.0
    %277 = vmatprep.subr.mxu0 0.0
    %278 = vmatpush1.msra.mxu0 0.0
    %279 = vmatprep.subr.mxu0 0.0
    %280 = vmatpush1.msra.mxu0 0.0
    %281 = vmatprep.mubr.f32.mxu0 0.0
    %282 = vmatmul.mubr.f32.gmra.mrb[0].mxu0 %v215
    %v283 = vpop.f32.mrb[0].mxu0
    %v284 = vadd.f32 %v211, %v283
    %v285 = vpop.f32.mrb[0].mxu0
    %286 = vdwg.mxu0
    %v287 = vmax.f32 %v284, 0.0
    %v288 = vld [vmem:[%s7] sm:$0xff]
    %v289 = vld [vmem:[%s7 + $0x8] sm:$0xff]
    %v290 = vld [vmem:[%s7 + $0x10] sm:$0xff]
    %v291 = vld [vmem:[%s7 + $0x18] sm:$0xff]
    %v292 = vld [vmem:[%s8] sm:$0x1]
    %v294 = vlaneseq
    %v295 = vshrl.u32 %v294, 7
    %v296 = vsub.s32 0, %v295
    %v297 = vrot.slane %v292, %v296
    %v300 = vsel %vm213, %v287, 0
    %302 = vmatprep.subr.mxu0 0.0
    %303 = vmatpush1.msra.mxu0 %v288
    %304 = vmatprep.subr.mxu0 0.0
    %305 = vmatpush1.msra.mxu0 %v289
    %306 = vmatprep.subr.mxu0 0.0
    %307 = vmatpush1.msra.mxu0 %v290
    %308 = vmatprep.subr.mxu0 0.0
    %309 = vmatpush1.msra.mxu0 %v291
    %310 = vmatprep.subr.mxu0 0.0
    %311 = vmatpush1.msra.mxu0 0.0
    %312 = vmatprep.subr.mxu0 0.0
    %313 = vmatpush1.msra.mxu0 0.0
    %314 = vmatprep.subr.mxu0 0.0
    %315 = vmatpush1.msra.mxu0 0.0
    %316 = vmatprep.subr.mxu0 0.0
    %317 = vmatpush1.msra.mxu0 0.0
    %318 = vmatprep.subr.mxu0 0.0
    %319 = vmatpush1.msra.mxu0 0.0
    %320 = vmatprep.subr.mxu0 0.0
    %321 = vmatpush1.msra.mxu0 0.0
    %322 = vmatprep.subr.mxu0 0.0
    %323 = vmatpush1.msra.mxu0 0.0
    %324 = vmatprep.subr.mxu0 0.0
    %325 = vmatpush1.msra.mxu0 0.0
    %326 = vmatprep.subr.mxu0 0.0
    %327 = vmatpush1.msra.mxu0 0.0
    %328 = vmatprep.subr.mxu0 0.0
    %329 = vmatpush1.msra.mxu0 0.0
    %330 = vmatprep.subr.mxu0 0.0
    %331 = vmatpush1.msra.mxu0 0.0
    %332 = vmatprep.subr.mxu0 0.0
    %333 = vmatpush1.msra.mxu0 0.0
    %334 = vmatprep.subr.mxu0 0.0
    %335 = vmatpush1.msra.mxu0 0.0
    %336 = vmatprep.subr.mxu0 0.0
    %337 = vmatpush1.msra.mxu0 0.0
    %338 = vmatprep.subr.mxu0 0.0
    %339 = vmatpush1.msra.mxu0 0.0
    %340 = vmatprep.subr.mxu0 0.0
    %341 = vmatpush1.msra.mxu0 0.0
    %342 = vmatprep.subr.mxu0 0.0
    %343 = vmatpush1.msra.mxu0 0.0
    %344 = vmatprep.subr.mxu0 0.0
    %345 = vmatpush1.msra.mxu0 0.0
    %346 = vmatprep.subr.mxu0 0.0
    %347 = vmatpush1.msra.mxu0 0.0
    %348 = vmatprep.subr.mxu0 0.0
    %349 = vmatpush1.msra.mxu0 0.0
    %350 = vmatprep.subr.mxu0 0.0
    %351 = vmatpush1.msra.mxu0 0.0
    %352 = vmatprep.subr.mxu0 0.0
    %353 = vmatpush1.msra.mxu0 0.0
    %354 = vmatprep.subr.mxu0 0.0
    %355 = vmatpush1.msra.mxu0 0.0
    %356 = vmatprep.subr.mxu0 0.0
    %357 = vmatpush1.msra.mxu0 0.0
    %358 = vmatprep.subr.mxu0 0.0
    %359 = vmatpush1.msra.mxu0 0.0
    %360 = vmatprep.subr.mxu0 0.0
    %361 = vmatpush1.msra.mxu0 0.0
    %362 = vmatprep.subr.mxu0 0.0
    %363 = vmatpush1.msra.mxu0 0.0
    %364 = vmatprep.subr.mxu0 0.0
    %365 = vmatpush1.msra.mxu0 0.0
    %366 = vmatprep.mubr.f32.mxu0 0.0
    %367 = vmatmul.mubr.f32.gmra.mrb[0].mxu0 %v300
    %v368 = vpop.f32.mrb[0].mxu0
    %v369 = vadd.f32 %v297, %v368
    %v370 = vpop.f32.mrb[0].mxu0
    %371 = vdwg.mxu0
    %v372 = vmax.f32 %v369, -20.0
    %v373 = vmin.f32 %v372, 2.0
    %v374 = vmul.f32 %v373, 1.442695
    %v375 = vpow.pop %v374
    %vm376 = vcmask 130112
    %v377 = vsel %vm376, %v369, -inf
    %378 = vmax.xlane.f32.xlu0 %v377
    %v379 = vpop.xlane.xlu0 %378
    %v380 = vsub.f32 %v369, %v379
    %v381 = vmul.f32 %v380, 1.442695
    %v382 = vpow.pop %v381
    %384 = vrot.lane.b32.xlu0 %v382, 120
    %v385 = vpop.permute.xlu0 %384
    %vm387 = vcmask 64512
    %v388 = vsel %vm387, %v385, 0.0
    %389 = vadd.xlane.f32.xlu0 %v388
    %v390 = vpop.xlane.xlu0 %389
    %v391 = vrcp.pop %v390
    %v392 = vmul.f32 %v382, %v391
    %v393 = vlog2.pop %v390
    %v394 = vmul.f32 %v393, 0.6931472
    %v395 = vmul.f32 %v392, %v380
    %397 = vrot.lane.b32.xlu0 %v395, 120
    %v398 = vpop.permute.xlu0 %397
    %v400 = vsel %vm387, %v398, 0.0
    %401 = vadd.xlane.f32.xlu0 %v400
    %v402 = vpop.xlane.xlu0 %401
    %v403 = vsub.f32 %v394, %v402
    %v404 = vadd.f32 %v373, 1.4189385
    %406 = vrot.lane.b32.xlu0 %v392, 120
    %v407 = vpop.permute.xlu0 %406
    %410 = vrot.lane.b32.xlu0 %v369, 8
    %v411 = vpop.permute.xlu0 %410
    %414 = vrot.lane.b32.xlu0 %v375, 8
    %v415 = vpop.permute.xlu0 %414
    %418 = vrot.lane.b32.xlu0 %v404, 12
    %v419 = vpop.permute.xlu0 %418
    %v421 = vsel %vm387, %v407, %v411
    %v422 = vsel %vm116, %v421, %v415
    %vm423 = vcmask 130048
    %v424 = vsel %vm423, %v422, %v419
    %vm425 = vcmask 162816
    %v426 = vsel %vm425, %v424, %v403
    %vm427 = vcmask 171008
    %v428 = vsel %vm427, %v426, 0.0
    %429 = vst [vmem:[#allocation2] sm:$0xff] %v428
    // Predicated region
    $region38: #{tpu_custom_call.1} parent=1 // pred_check
      _
    $region39: #{tpu_custom_call.1} parent=1 // pred_check_branch
      %431 = sbr.rel (0) target = $region41
    $region40: #{tpu_custom_call.1} parent=1 // pred_region
      %s433 = ssub.s32 128, 128
      %434 = vsyncadd [#allocation3], %s433
      %s436 = sshll.u32 [#allocation2], 4
      %s437 = int_to_ptr.vmem [resolvable:$true] %s436
      %439 = dma.vmem_to_hbm [thread:$0]  %s437, 128, %s9, [#allocation3]
    $region41: #{tpu_custom_call.1} parent=1 // pred_fallthru
      _
    // Predicated region
    $region42: #{tpu_custom_call.1} parent=1 // pred_check
      _
    $region43: #{tpu_custom_call.1} parent=1 // pred_check_branch
      %441 = sbr.rel (0) target = $region45
    $region44: #{tpu_custom_call.1} parent=1 // pred_region
      %442 = dma.done [#allocation3], 128
    $region45: #{tpu_custom_call.1} parent=1 // pred_fallthru
      _
    %443 = vsyncpa [#allocation3], 1

</llo_original>
